<compile_context>
chip_gen: v7x
topology: tpu7x:2x2x1
jax: 0.10.0
libtpu: 0.0.40
codegen_flags: <defaults>
</compile_context>

<pallas_src>
import jax
import jax.numpy as jnp
from jax.experimental import pallas as pl
from jax.experimental.pallas import tpu as pltpu

_LANES = 128                       # lanes per vreg (all chips)
_MAX_WHOLE_PIN_ROWS = 1024         # above this, switch to the batch grid
_MAX_WHOLE_PIN_BYTES = 8 << 20     # conservative vs. v5e 16 MiB default scope
_GRID_BLOCK_ROWS = 512             # rows per grid step (multiple of sublanes)
_MiB = 1 << 20


def _round_up(n, m):
    return ((n + m - 1) // m) * m


def _sublanes(dtype):
    """Sublane padding for a full packed vreg: 8 (f32), 16 (bf16), 32 (int8)."""
    return max(8, 32 // jnp.dtype(dtype).itemsize)


def _qnet_kernel(x_ref, w_ref, b_ref, o_ref):
    # One MXU matmul with f32 accumulation, then a (free) broadcast VPU bias
    # add in f32 -- exactly nn.Linear's x @ W.T + b semantics.
    acc = jnp.dot(x_ref[...], w_ref[...], preferred_element_type=jnp.float32)
    o_ref[...] = (acc + b_ref[...]).astype(o_ref.dtype)


def prepare_qnet_params(weight, bias):
    """One-time parameter preparation (hoisted out of the per-call path).

    weight: [A, H]  (PyTorch nn.Linear layout: [out_features, in_features])
    bias:   [A]
    returns dict with lane-padded transposed weight [H, A_pad], f32 bias
    [1, A_pad] and the true action count.
    """
    A, H = weight.shape
    assert bias.shape == (A,)
    A_pad = _round_up(max(A, _LANES), _LANES)          # lane-dense output
    w_pad = jnp.zeros((H, A_pad), dtype=weight.dtype).at[:, :A].set(weight.T)
    b_pad = jnp.zeros((1, A_pad), dtype=jnp.float32).at[0, :A].set(
        bias.astype(jnp.float32))
    return {"w": w_pad, "b": b_pad, "nr_actions": A}


def qnet_forward(decoder_out, params):
    """QNet forward: decoder_out @ weight.T + bias.

    decoder_out: [..., H]   (any leading dims, like nn.Linear)
    params:      output of prepare_qnet_params
    returns:     [..., A]
    """
    w_pad, b_pad, A = params["w"], params["b"], params["nr_actions"]
    *lead, H = decoder_out.shape
    assert w_pad.shape[0] == H, f"hidden-size mismatch: {H} vs {w_pad.shape[0]}"
    A_pad = w_pad.shape[1]
    dtype = decoder_out.dtype
    itemsize = jnp.dtype(dtype).itemsize

    x2d = decoder_out.reshape(-1, H)
    B = x2d.shape[0]
    sub = _sublanes(dtype)
    B_min = _round_up(max(B, sub), sub)

    w_bytes = w_pad.size * jnp.dtype(w_pad.dtype).itemsize
    b_bytes = b_pad.size * 4
    whole_bytes = B_min * H * itemsize + w_bytes + b_bytes + B_min * A_pad * itemsize

    use_grid = (B_min > _MAX_WHOLE_PIN_ROWS) or (whole_bytes > _MAX_WHOLE_PIN_BYTES)

    if use_grid:
        TB = _round_up(min(B_min, _GRID_BLOCK_ROWS), sub)
        B_pad = _round_up(B_min, TB)
    else:
        TB = B_min
        B_pad = B_min

    if B_pad != B:
        x2d = jnp.pad(x2d, ((0, B_pad - B), (0, 0)))

    cost = pl.CostEstimate(
        flops=2 * B_pad * H * A_pad,
        transcendentals=0,
        bytes_accessed=B_pad * H * itemsize + w_bytes + b_bytes
        + B_pad * A_pad * itemsize,
    )

    if not use_grid:
        # Whole problem fits comfortably in one VMEM tile: no grid, no
        # pipeline bookkeeping; everything pinned in VMEM.
        vmem_limit = int(min(32 * _MiB, max(4 * _MiB, 2 * whole_bytes)))
        out = pl.pallas_call(
            _qnet_kernel,
            out_shape=jax.ShapeDtypeStruct((B_pad, A_pad), dtype),
            in_specs=[
                pl.BlockSpec(memory_space=pltpu.MemorySpace.VMEM),
                pl.BlockSpec(memory_space=pltpu.MemorySpace.VMEM),
                pl.BlockSpec(memory_space=pltpu.MemorySpace.VMEM),
            ],
            out_specs=pl.BlockSpec(memory_space=pltpu.MemorySpace.VMEM),
            compiler_params=pltpu.CompilerParams(vmem_limit_bytes=vmem_limit),
            cost_estimate=cost,
        )(x2d, w_pad, b_pad)
    else:
        # Batch grid: weight/bias stay resident, activations/outputs stream
        # in TB-row tiles; "parallel" lets megacore chips shard the rows and
        # VMEM stays bounded regardless of B.
        step_bytes = 2 * TB * (H + A_pad) * itemsize + w_bytes + b_bytes
        vmem_limit = int(min(32 * _MiB, max(4 * _MiB, 2 * step_bytes)))
        out = pl.pallas_call(
            _qnet_kernel,
            out_shape=jax.ShapeDtypeStruct((B_pad, A_pad), dtype),
            grid=(B_pad // TB,),
            in_specs=[
                pl.BlockSpec((TB, H), lambda i: (i, 0)),
                pl.BlockSpec((H, A_pad), lambda i: (0, 0)),
                pl.BlockSpec((1, A_pad), lambda i: (0, 0)),
            ],
            out_specs=pl.BlockSpec((TB, A_pad), lambda i: (i, 0)),
            compiler_params=pltpu.CompilerParams(
                dimension_semantics=("parallel",),
                vmem_limit_bytes=vmem_limit,
            ),
            cost_estimate=cost,
        )(x2d, w_pad, b_pad)

    return out[:B, :A].reshape(*lead, A)


if __name__ == "__main__":
    # Shapes implied by the module: hidden_size=32, nr_actions=4, batch=2.
    B, hidden_size, nr_actions = 2, 32, 4

    key = jax.random.PRNGKey(0)
    kx, kw, kb, kx2 = jax.random.split(key, 4)

    # Deterministic PyTorch-Linear-style init (uniform +/- 1/sqrt(fan_in)),
    # stored in the PyTorch layout: weight [A, H], bias [A].
    bound = 1.0 / (hidden_size ** 0.5)
    weight = jax.random.uniform(kw, (nr_actions, hidden_size),
                                minval=-bound, maxval=bound, dtype=jnp.float32)
    bias = jax.random.uniform(kb, (nr_actions,),
                              minval=-bound, maxval=bound, dtype=jnp.float32)

    # One-time parameter preparation (out of the hot path).
    params = prepare_qnet_params(weight, bias)

    # Small-batch path (no grid, whole VMEM pin).
    decoder_out = jax.random.normal(kx, (B, hidden_size), dtype=jnp.float32)
    q_values = jax.block_until_ready(qnet_forward(decoder_out, params))
    ref = decoder_out @ weight.T + bias
    assert q_values.shape == (B, nr_actions)
    assert jnp.allclose(q_values, ref, atol=1e-5, rtol=1e-5)

    # Large-batch path (batch grid, resident weights).
    B_big = 2048
    decoder_big = jax.random.normal(kx2, (B_big, hidden_size), dtype=jnp.float32)
    q_big = jax.block_until_ready(qnet_forward(decoder_big, params))
    ref_big = decoder_big @ weight.T + bias
    assert q_big.shape == (B_big, nr_actions)
    assert jnp.allclose(q_big, ref_big, atol=1e-4, rtol=1e-4)

    print("KERNEL_OK")
</pallas_src>

<mosaic_0001>
module attributes {stable_mosaic.version = 11 : i64} {
  func.func @_qnet_kernel(%arg0: memref<8x32xf32, #tpu.memory_space<vmem>>, %arg1: memref<32x128xf32, #tpu.memory_space<vmem>>, %arg2: memref<1x128xf32, #tpu.memory_space<vmem>>, %arg3: memref<8x128xf32, #tpu.memory_space<vmem>>) attributes {dimension_semantics = [], scalar_prefetch = 0 : i64, scratch_operands = 0 : i64, tpu.core_type = #tpu.core_type<tc>} {
    %c0 = arith.constant 0 : index
    %c0_0 = arith.constant 0 : index
    %0 = vector.load %arg0[%c0, %c0_0] : memref<8x32xf32, #tpu.memory_space<vmem>>, vector<8x32xf32>
    %c0_1 = arith.constant 0 : index
    %c0_2 = arith.constant 0 : index
    %1 = vector.load %arg1[%c0_1, %c0_2] : memref<32x128xf32, #tpu.memory_space<vmem>>, vector<32x128xf32>
    %cst = arith.constant dense<0.000000e+00> : vector<8x128xf32>
    %2 = tpu.matmul %0, %1, %cst {dimension_numbers = #tpu.dot_dimension_numbers<[1], [0], [0], [1], [0, 0, 1, 1], [], []>} : vector<8x32xf32>, vector<32x128xf32>, vector<8x128xf32> -> vector<8x128xf32>
    %c0_3 = arith.constant 0 : index
    %c0_4 = arith.constant 0 : index
    %3 = vector.load %arg2[%c0_3, %c0_4] : memref<1x128xf32, #tpu.memory_space<vmem>>, vector<1x128xf32>
    %4 = vector.broadcast %3 : vector<1x128xf32> to vector<8x128xf32>
    %5 = arith.addf %2, %4 : vector<8x128xf32>
    %c0_5 = arith.constant 0 : index
    %c0_6 = arith.constant 0 : index
    %6 = vector.load %arg3[%c0_5, %c0_6] : memref<8x128xf32, #tpu.memory_space<vmem>>, vector<8x128xf32>
    tpu.vector_store %arg3[%c0_5, %c0_6], %5 {strides = array<i32>} : memref<8x128xf32, #tpu.memory_space<vmem>>, vector<8x128xf32>,
    return
  }
}

</mosaic_0001>

<llo_original>
// kernel: tpu_custom_call.1
$region0: #{tpu_custom_call.1}
  #allocation0 [shape = 'u32[]', space=smem, size = 0x4, offset = 0x4, fixed_abs, tag = 'smem constant byte address 0x4 - core index']
  #allocation1 [shape = 'u32[144,128]{1,0:T(1,128)}', space=vmem, size = 0x12000, scoped, tag = 'internal scratch']
  %s0 = inlined_call_operand.hbm [shape: f32[8,32], index: 0, kind: input, shape index: {}]
  %s1 = inlined_call_operand.hbm [shape: f32[32,128], index: 1, kind: input, shape index: {}]
  %s2 = inlined_call_operand.vmem [shape: f32[1,128], index: 2, kind: input, shape index: {}]
  %s3 = inlined_call_operand.hbm [shape: f32[8,128], index: 3, kind: output, shape index: {}]
  %s4 = sld [smem:[#allocation0]]
  $region30: #{tpu_custom_call.1} parent=0
    _
  %s6 = ssub.s32 1, %s4
  %s7 = scalar_select 0, %s6, %s4
  $region1: #{tpu_custom_call.1} parent=0
    #allocation2 [shape = 'u8[4096]{0}', space=vmem, size = 0x1000, scoped, tag = 'input window, operand 0, single buffered']
    #allocation3 [shape = 's32[1]{0}', space=sflag, size = 0x4, scoped, tag = 'scoped memory for tpu_custom_call.1']
    #allocation4 [shape = 's32[1]{0}', space=sflag, size = 0x4, scoped, tag = 'scoped memory for tpu_custom_call.1']
    #allocation5 [shape = 'u8[16384]{0}', space=vmem, size = 0x4000, scoped, tag = 'input window, operand 1, single buffered']
    #allocation6 [shape = 's32[1]{0}', space=sflag, size = 0x4, scoped, tag = 'scoped memory for tpu_custom_call.1']
    #allocation7 [shape = 'u8[4096]{0}', space=vmem, size = 0x1000, scoped, tag = 'output window, operand 0, single buffered']
    %8 = vsyncpa [#allocation3], 0
    %9 = vsyncpa [#allocation6], 0
    %10 = vsyncpa [#allocation4], 0
    // Predicated region
    $region2: #{tpu_custom_call.1} parent=1 // pred_check
      _
    $region3: #{tpu_custom_call.1} parent=1 // pred_check_branch
      %12 = sbr.rel (0) target = $region5
    $region4: #{tpu_custom_call.1} parent=1 // pred_region
      %s14 = ssub.s32 128, 128
      %15 = vsyncadd [#allocation3], %s14
      %s17 = sshll.u32 [#allocation2], 4
      %s18 = int_to_ptr.vmem [resolvable:$true] %s17
      %20 = dma.hbm_to_vmem [thread:$0]  %s0, 128, %s18, [#allocation3]
    $region5: #{tpu_custom_call.1} parent=1 // pred_fallthru
      _
    // Predicated region
    $region6: #{tpu_custom_call.1} parent=1 // pred_check
      _
    $region7: #{tpu_custom_call.1} parent=1 // pred_check_branch
      %22 = sbr.rel (0) target = $region9
    $region8: #{tpu_custom_call.1} parent=1 // pred_region
      %s24 = ssub.s32 512, 512
      %25 = vsyncadd [#allocation6], %s24
      %s26 = sshll.u32 [#allocation5], 4
      %s27 = int_to_ptr.vmem [resolvable:$true] %s26
      %32 = dma.hbm_to_vmem [thread:$0]  %s1, 512, %s27, [#allocation6], 128, 128, 8
    $region9: #{tpu_custom_call.1} parent=1 // pred_fallthru
      _
    // Predicated region
    $region10: #{tpu_custom_call.1} parent=1 // pred_check
      _
    $region11: #{tpu_custom_call.1} parent=1 // pred_check_branch
      %34 = sbr.rel (0) target = $region13
    $region12: #{tpu_custom_call.1} parent=1 // pred_region
      _
    $region13: #{tpu_custom_call.1} parent=1 // pred_fallthru
      _
    // Predicated region
    $region14: #{tpu_custom_call.1} parent=1 // pred_check
      _
    $region15: #{tpu_custom_call.1} parent=1 // pred_check_branch
      %36 = sbr.rel (0) target = $region17
    $region16: #{tpu_custom_call.1} parent=1 // pred_region
      %37 = dma.done [#allocation3], 128
    $region17: #{tpu_custom_call.1} parent=1 // pred_fallthru
      _
    // Predicated region
    $region18: #{tpu_custom_call.1} parent=1 // pred_check
      _
    $region19: #{tpu_custom_call.1} parent=1 // pred_check_branch
      %39 = sbr.rel (0) target = $region21
    $region20: #{tpu_custom_call.1} parent=1 // pred_region
      %40 = dma.done [#allocation6], 512
    $region21: #{tpu_custom_call.1} parent=1 // pred_fallthru
      _
    %v41 = vld [vmem:[#allocation2] sm:$0xff]
    %v42 = vld [vmem:[#allocation5] sm:$0xff]
    %v43 = vld [vmem:[#allocation5 + $0x8] sm:$0xff]
    %v44 = vld [vmem:[#allocation5 + $0x10] sm:$0xff]
    %v45 = vld [vmem:[#allocation5 + $0x18] sm:$0xff]
    %v46 = vld [vmem:[%s2] sm:$0x1]
    %v48 = vlaneseq
    %v49 = vshrl.u32 %v48, 7
    %v50 = vsub.s32 0, %v49
    %v51 = vrot.slane %v46, %v50
    %vm53 = vcmask 261120
    %v55 = vsel %vm53, %v41, 0
    %57 = vmatprep.subr.mxu0 0.0
    %58 = vmatpush1.msra.mxu0 %v42
    %59 = vmatprep.subr.mxu0 0.0
    %60 = vmatpush1.msra.mxu0 %v43
    %61 = vmatprep.subr.mxu0 0.0
    %62 = vmatpush1.msra.mxu0 %v44
    %63 = vmatprep.subr.mxu0 0.0
    %64 = vmatpush1.msra.mxu0 %v45
    %65 = vmatprep.subr.mxu0 0.0
    %66 = vmatpush1.msra.mxu0 0.0
    %67 = vmatprep.subr.mxu0 0.0
    %68 = vmatpush1.msra.mxu0 0.0
    %69 = vmatprep.subr.mxu0 0.0
    %70 = vmatpush1.msra.mxu0 0.0
    %71 = vmatprep.subr.mxu0 0.0
    %72 = vmatpush1.msra.mxu0 0.0
    %73 = vmatprep.subr.mxu0 0.0
    %74 = vmatpush1.msra.mxu0 0.0
    %75 = vmatprep.subr.mxu0 0.0
    %76 = vmatpush1.msra.mxu0 0.0
    %77 = vmatprep.subr.mxu0 0.0
    %78 = vmatpush1.msra.mxu0 0.0
    %79 = vmatprep.subr.mxu0 0.0
    %80 = vmatpush1.msra.mxu0 0.0
    %81 = vmatprep.subr.mxu0 0.0
    %82 = vmatpush1.msra.mxu0 0.0
    %83 = vmatprep.subr.mxu0 0.0
    %84 = vmatpush1.msra.mxu0 0.0
    %85 = vmatprep.subr.mxu0 0.0
    %86 = vmatpush1.msra.mxu0 0.0
    %87 = vmatprep.subr.mxu0 0.0
    %88 = vmatpush1.msra.mxu0 0.0
    %89 = vmatprep.subr.mxu0 0.0
    %90 = vmatpush1.msra.mxu0 0.0
    %91 = vmatprep.subr.mxu0 0.0
    %92 = vmatpush1.msra.mxu0 0.0
    %93 = vmatprep.subr.mxu0 0.0
    %94 = vmatpush1.msra.mxu0 0.0
    %95 = vmatprep.subr.mxu0 0.0
    %96 = vmatpush1.msra.mxu0 0.0
    %97 = vmatprep.subr.mxu0 0.0
    %98 = vmatpush1.msra.mxu0 0.0
    %99 = vmatprep.subr.mxu0 0.0
    %100 = vmatpush1.msra.mxu0 0.0
    %101 = vmatprep.subr.mxu0 0.0
    %102 = vmatpush1.msra.mxu0 0.0
    %103 = vmatprep.subr.mxu0 0.0
    %104 = vmatpush1.msra.mxu0 0.0
    %105 = vmatprep.subr.mxu0 0.0
    %106 = vmatpush1.msra.mxu0 0.0
    %107 = vmatprep.subr.mxu0 0.0
    %108 = vmatpush1.msra.mxu0 0.0
    %109 = vmatprep.subr.mxu0 0.0
    %110 = vmatpush1.msra.mxu0 0.0
    %111 = vmatprep.subr.mxu0 0.0
    %112 = vmatpush1.msra.mxu0 0.0
    %113 = vmatprep.subr.mxu0 0.0
    %114 = vmatpush1.msra.mxu0 0.0
    %115 = vmatprep.subr.mxu0 0.0
    %116 = vmatpush1.msra.mxu0 0.0
    %117 = vmatprep.subr.mxu0 0.0
    %118 = vmatpush1.msra.mxu0 0.0
    %119 = vmatprep.subr.mxu0 0.0
    %120 = vmatpush1.msra.mxu0 0.0
    %121 = vmatprep.mubr.f32.mxu0 0.0
    %122 = vmatmul.mubr.f32.gmra.mrb[0].mxu0 %v55
    %v123 = vpop.f32.mrb[0].mxu0
    %v124 = vadd.f32 %v51, %v123
    %v125 = vpop.f32.mrb[0].mxu0
    %126 = vdwg.mxu0
    %127 = vst [vmem:[#allocation7] sm:$0xff] %v124
    // Predicated region
    $region22: #{tpu_custom_call.1} parent=1 // pred_check
      _
    $region23: #{tpu_custom_call.1} parent=1 // pred_check_branch
      %129 = sbr.rel (0) target = $region25
    $region24: #{tpu_custom_call.1} parent=1 // pred_region
      %s131 = ssub.s32 128, 128
      %132 = vsyncadd [#allocation4], %s131
      %s134 = sshll.u32 [#allocation7], 4
      %s135 = int_to_ptr.vmem [resolvable:$true] %s134
      %137 = dma.vmem_to_hbm [thread:$0]  %s135, 128, %s3, [#allocation4]
    $region25: #{tpu_custom_call.1} parent=1 // pred_fallthru
      _
    // Predicated region
    $region26: #{tpu_custom_call.1} parent=1 // pred_check
      _
    $region27: #{tpu_custom_call.1} parent=1 // pred_check_branch
      %139 = sbr.rel (0) target = $region29
    $region28: #{tpu_custom_call.1} parent=1 // pred_region
      %140 = dma.done [#allocation4], 128
    $region29: #{tpu_custom_call.1} parent=1 // pred_fallthru
      _
    %141 = vsyncpa [#allocation3], 1
    %142 = vsyncpa [#allocation6], 1
    %143 = vsyncpa [#allocation4], 1

</llo_original>
